<compile_context>
chip_gen: v5e
topology: v5e:2x2
jax: 0.10.0
libtpu: 0.0.40
codegen_flags: <defaults>
</compile_context>

<pallas_src>
import jax
import jax.numpy as jnp
from jax.experimental import pallas as pl
from jax.experimental.pallas import tpu as pltpu

LANE = 128
SUBLANE = 8
MAX_TILE_ROWS = 4096  # 4096 * 128 * 4 B = 2 MiB per f32 input block


def _make_l1_sum_kernel(tail_rows):
    """Build the kernel; tail_rows = #valid rows in the last (partial) block, 0 if none."""

    def kernel(pred_ref, gt_ref, out_ref, acc_ref):
        pid = pl.program_id(0)
        last = pl.num_programs(0) - 1

        @pl.when(pid == 0)
        def _init():
            acc_ref[...] = jnp.zeros_like(acc_ref)

        # Cast in-register (keeps HBM traffic at the source dtype width).
        d = jnp.abs(pred_ref[...].astype(jnp.float32)
                    - gt_ref[...].astype(jnp.float32))

        if tail_rows:
            # Steady-state blocks: mask-free pure VPU accumulate.
            @pl.when(pid != last)
            def _steady():
                acc_ref[...] += d

            # Last (partial) block: zero out the out-of-bounds rows before
            # accumulating (OOB rows of the block contain unspecified data).
            @pl.when(pid == last)
            def _tail():
                row_ids = jax.lax.broadcasted_iota(jnp.int32, d.shape, 0)
                acc_ref[...] += jnp.where(row_ids < tail_rows, d, 0.0)
        else:
            acc_ref[...] += d

        # Single cross-lane/sublane reduce + SMEM scalar store at the end.
        @pl.when(pid == last)
        def _finalize():
            out_ref[0, 0] = jnp.sum(acc_ref[...])

    return kernel


def l1_mean_pallas(pred, gt):
    """mean(|pred - gt|) over all elements, reduction done in Pallas."""
    assert pred.shape == gt.shape
    n = pred.size

    p = pred.reshape(-1)
    g = gt.reshape(-1)

    # Rare fallback: pad only when the element count is not lane-aligned
    # (at most 127 elements).  |0 - 0| = 0 so the sum is unchanged; the mean
    # divides by the true n.
    pad = (-n) % LANE
    if pad:
        p = jnp.pad(p, (0, pad))
        g = jnp.pad(g, (0, pad))

    rows = (n + pad) // LANE
    p2 = p.reshape(rows, LANE)   # free reshape (contiguous)
    g2 = g.reshape(rows, LANE)

    if rows <= MAX_TILE_ROWS:
        tile_rows = rows          # single block covering the whole array
        grid = 1
        tail_rows = 0
    else:
        tile_rows = MAX_TILE_ROWS
        grid = pl.cdiv(rows, tile_rows)
        tail_rows = rows % tile_rows  # 0 if tile_rows divides rows

    total = pl.pallas_call(
        _make_l1_sum_kernel(tail_rows),
        out_shape=jax.ShapeDtypeStruct((1, 1), jnp.float32),
        grid_spec=pltpu.PrefetchScalarGridSpec(
            num_scalar_prefetch=0,
            grid=(grid,),
            in_specs=[
                pl.BlockSpec((tile_rows, LANE), lambda i: (i, 0)),
                pl.BlockSpec((tile_rows, LANE), lambda i: (i, 0)),
            ],
            out_specs=pl.BlockSpec(memory_space=pltpu.SMEM),
            scratch_shapes=[pltpu.VMEM((tile_rows, LANE), jnp.float32)],
        ),
        compiler_params=pltpu.CompilerParams(
            dimension_semantics=("arbitrary",),
            vmem_limit_bytes=32 * 1024 * 1024,
        ),
    )(p2, g2)

    return total[0, 0] / jnp.float32(n)


def loss_wrapper_forward(pred, gt, soft_mask=None, logvar=None):
    """Faithful port of LossWrapper.forward (method='l1')."""
    loss = l1_mean_pallas(pred, gt)  # scalar
    if soft_mask is not None:
        # PyTorch: loss * soft_mask.detach().view(-1, 1)  -> scalar * tensor
        loss = loss * jax.lax.stop_gradient(soft_mask).reshape(-1, 1)
    if logvar is not None:
        loss = loss * jnp.exp(-logvar)
    return jnp.mean(loss)


if __name__ == "__main__":
    key = jax.random.PRNGKey(0)
    k1, k2, k3, k4, k5, k6, k7, k8 = jax.random.split(key, 8)

    # --- Test 1: optical-flow-like inputs (NCHW, 2 flow channels), small. ---
    B, C, H, W = 2, 2, 16, 16
    pred = jax.random.normal(k1, (B, C, H, W), dtype=jnp.float32)
    gt = jax.random.normal(k2, (B, C, H, W), dtype=jnp.float32)
    soft_mask = jax.random.uniform(k3, (B,), dtype=jnp.float32)
    logvar = jax.random.normal(k4, (B, 1), dtype=jnp.float32) * 0.1

    out = jax.block_until_ready(loss_wrapper_forward(pred, gt))
    ref = jnp.mean(jnp.abs(pred - gt))
    assert jnp.allclose(out, ref, rtol=1e-5, atol=1e-6), (out, ref)

    out2 = jax.block_until_ready(
        loss_wrapper_forward(pred, gt, soft_mask=soft_mask, logvar=logvar))
    ref2 = jnp.mean(
        jnp.mean(jnp.abs(pred - gt)) * soft_mask.reshape(-1, 1) * jnp.exp(-logvar))
    assert jnp.allclose(out2, ref2, rtol=1e-5, atol=1e-6), (out2, ref2)

    # --- Test 2: multi-block path with a partial (masked) tail block. ---
    # rows = 2*2*640*512/128 = 10240 -> grid=3 with tile_rows=4096, tail=2048.
    pred_big = jax.random.normal(k5, (2, 2, 640, 512), dtype=jnp.float32)
    gt_big = jax.random.normal(k6, (2, 2, 640, 512), dtype=jnp.float32)
    out_big = jax.block_until_ready(loss_wrapper_forward(pred_big, gt_big))
    ref_big = jnp.mean(jnp.abs(pred_big - gt_big))
    assert jnp.allclose(out_big, ref_big, rtol=1e-4, atol=1e-6), (out_big, ref_big)

    # --- Test 3: lane-unaligned element count (pad fallback path). ---
    pred_odd = jax.random.normal(k7, (1, 2, 7, 9), dtype=jnp.float32)
    gt_odd = jax.random.normal(k8, (1, 2, 7, 9), dtype=jnp.float32)
    out_odd = jax.block_until_ready(loss_wrapper_forward(pred_odd, gt_odd))
    ref_odd = jnp.mean(jnp.abs(pred_odd - gt_odd))
    assert jnp.allclose(out_odd, ref_odd, rtol=1e-5, atol=1e-6), (out_odd, ref_odd)

    print("KERNEL_OK")
</pallas_src>

<mosaic_0001>
module attributes {stable_mosaic.version = 11 : i64} {
  func.func @kernel(%arg0: i32, %arg1: memref<8x128xf32, #tpu.memory_space<vmem>>, %arg2: memref<8x128xf32, #tpu.memory_space<vmem>>, %arg3: memref<1x1xf32, #tpu.memory_space<smem>>, %arg4: memref<8x128xf32, #tpu.memory_space<vmem>>) attributes {dimension_semantics = [#tpu.dimension_semantics<arbitrary>], iteration_bounds = array<i64: 1>, scalar_prefetch = 0 : i64, scratch_operands = 1 : i64, tpu.core_type = #tpu.core_type<tc>, window_params = [{transform_indices = @transform_0, window_bounds = array<i64: 8, 128>}, {transform_indices = @transform_1, window_bounds = array<i64: 8, 128>}, {transform_indices = @transform_2, window_bounds = array<i64: 1, 1>}]} {
    %c0_i32 = arith.constant 0 : i32
    %0 = arith.cmpi eq, %arg0, %c0_i32 : i32
    %1 = arith.extui %0 : i1 to i32
    %c0_i32_0 = arith.constant 0 : i32
    %2 = arith.cmpi ne, %1, %c0_i32_0 : i32
    scf.if %2 {
      %cst = arith.constant 0.000000e+00 : f32
      %13 = vector.broadcast %cst : f32 to vector<8x128xf32>
      %c0_10 = arith.constant 0 : index
      %c0_11 = arith.constant 0 : index
      %14 = vector.load %arg4[%c0_10, %c0_11] : memref<8x128xf32, #tpu.memory_space<vmem>>, vector<8x128xf32>
      tpu.vector_store %arg4[%c0_10, %c0_11], %13 {strides = array<i32>} : memref<8x128xf32, #tpu.memory_space<vmem>>, vector<8x128xf32>,
    } else {
    }
    %c0 = arith.constant 0 : index
    %c0_1 = arith.constant 0 : index
    %3 = vector.load %arg1[%c0, %c0_1] : memref<8x128xf32, #tpu.memory_space<vmem>>, vector<8x128xf32>
    %c0_2 = arith.constant 0 : index
    %c0_3 = arith.constant 0 : index
    %4 = vector.load %arg2[%c0_2, %c0_3] : memref<8x128xf32, #tpu.memory_space<vmem>>, vector<8x128xf32>
    %5 = arith.subf %3, %4 : vector<8x128xf32>
    %6 = math.absf %5 : vector<8x128xf32>
    %c0_4 = arith.constant 0 : index
    %c0_5 = arith.constant 0 : index
    %7 = vector.load %arg4[%c0_4, %c0_5] : memref<8x128xf32, #tpu.memory_space<vmem>>, vector<8x128xf32>
    %8 = arith.addf %7, %6 : vector<8x128xf32>
    %c0_6 = arith.constant 0 : index
    %c0_7 = arith.constant 0 : index
    %9 = vector.load %arg4[%c0_6, %c0_7] : memref<8x128xf32, #tpu.memory_space<vmem>>, vector<8x128xf32>
    tpu.vector_store %arg4[%c0_6, %c0_7], %8 {strides = array<i32>} : memref<8x128xf32, #tpu.memory_space<vmem>>, vector<8x128xf32>,
    %c0_i32_8 = arith.constant 0 : i32
    %10 = arith.cmpi eq, %arg0, %c0_i32_8 : i32
    %11 = arith.extui %10 : i1 to i32
    %c0_i32_9 = arith.constant 0 : i32
    %12 = arith.cmpi ne, %11, %c0_i32_9 : i32
    scf.if %12 {
      %c0_10 = arith.constant 0 : index
      %c0_11 = arith.constant 0 : index
      %13 = vector.load %arg4[%c0_10, %c0_11] : memref<8x128xf32, #tpu.memory_space<vmem>>, vector<8x128xf32>
      %14 = vector.shape_cast %13 : vector<8x128xf32> to vector<1x8x128xf32>
      %cst = arith.constant dense<0.000000e+00> : vector<1xf32>
      %15 = vector.multi_reduction <add>, %14, %cst [1, 2] : vector<1x8x128xf32> to vector<1xf32>
      %16 = vector.shape_cast %15 : vector<1xf32> to vector<1x1x1xf32>
      %17 = vector.extract %16[0, 0, 0] : f32 from vector<1x1x1xf32>
      %c0_12 = arith.constant 0 : index
      %c0_13 = arith.constant 0 : index
      %18 = memref.load %arg3[%c0_12, %c0_13] : memref<1x1xf32, #tpu.memory_space<smem>>
      memref.store %17, %arg3[%c0_12, %c0_13] : memref<1x1xf32, #tpu.memory_space<smem>>
    } else {
    }
    return
  }
  func.func @transform_0(%arg0: i32) -> (i32, i32) {
    %c0_i32 = arith.constant 0 : i32
    %c0_i32_0 = arith.constant 0 : i32
    return %arg0, %c0_i32 : i32, i32
  }
  func.func @transform_1(%arg0: i32) -> (i32, i32) {
    %c0_i32 = arith.constant 0 : i32
    %c0_i32_0 = arith.constant 0 : i32
    return %arg0, %c0_i32 : i32, i32
  }
  func.func @transform_2(%arg0: i32) -> (i32, i32) {
    %c0_i32 = arith.constant 0 : i32
    %c0_i32_0 = arith.constant 0 : i32
    %c0_i32_1 = arith.constant 0 : i32
    return %c0_i32, %c0_i32_0 : i32, i32
  }
}

</mosaic_0001>

<llo_original>
// kernel: tpu_custom_call.1
$region0: #{tpu_custom_call.1}
  #allocation0 [shape = 'u32[]', space=smem, size = 0x4, offset = 0x4, fixed_abs, tag = 'smem constant byte address 0x4 - core index']
  #allocation1 [shape = 'u32[72,128]{1,0:T(1,128)}', space=vmem, size = 0x9000, scoped, tag = 'internal scratch']
  #allocation2 [shape = 'f32[8,128]{1,0:T(8,128)}', space=vmem, size = 0x1000, scoped, tag = 'scratch operand']
  %s0 = inlined_call_operand.hbm [shape: f32[8,128], index: 0, kind: input, shape index: {}]
  %s1 = inlined_call_operand.hbm [shape: f32[8,128], index: 1, kind: input, shape index: {}]
  %s2 = inlined_call_operand.hbm [shape: f32[1,1], index: 2, kind: output, shape index: {}]
  %s3 = sld [smem:[#allocation0]]
  $region34: #{tpu_custom_call.1} parent=0
    _
  %s5 = ssub.s32 1, %s3
  %s6 = scalar_select 0, %s5, %s3
  $region1: #{tpu_custom_call.1} parent=0
    #allocation3 [shape = 'u8[4096]{0}', space=vmem, size = 0x1000, scoped, tag = 'input window, operand 0, single buffered']
    #allocation4 [shape = 's32[1]{0}', space=sflag, size = 0x4, scoped, tag = 'scoped memory for tpu_custom_call.1']
    #allocation5 [shape = 's32[1]{0}', space=sflag, size = 0x4, scoped, tag = 'scoped memory for tpu_custom_call.1']
    #allocation6 [shape = 'u8[4096]{0}', space=vmem, size = 0x1000, scoped, tag = 'input window, operand 1, single buffered']
    #allocation7 [shape = 's32[1]{0}', space=sflag, size = 0x4, scoped, tag = 'scoped memory for tpu_custom_call.1']
    #allocation8 [shape = 'u8[512]{0}', space=smem, size = 0x200, scoped, tag = 'output window, operand 0, single buffered']
    %7 = vsyncpa [#allocation4], 0
    %8 = vsyncpa [#allocation7], 0
    %9 = vsyncpa [#allocation5], 0
    // Predicated region
    $region2: #{tpu_custom_call.1} parent=1 // pred_check
      _
    $region3: #{tpu_custom_call.1} parent=1 // pred_check_branch
      %11 = sbr.rel (0) target = $region5
    $region4: #{tpu_custom_call.1} parent=1 // pred_region
      %13 = vsyncadd [#allocation4], 0
      %s15 = sshll.u32 %s0, 4
      %s16 = int_to_ptr.hbm [resolvable:$true] %s15
      %s17 = sshll.u32 [#allocation3], 4
      %s18 = int_to_ptr.vmem [resolvable:$true] %s17
      %20 = dma.hbm_to_vmem [thread:$0]  %s16, 128, %s18, [#allocation4]
    $region5: #{tpu_custom_call.1} parent=1 // pred_fallthru
      _
    // Predicated region
    $region6: #{tpu_custom_call.1} parent=1 // pred_check
      _
    $region7: #{tpu_custom_call.1} parent=1 // pred_check_branch
      %22 = sbr.rel (0) target = $region9
    $region8: #{tpu_custom_call.1} parent=1 // pred_region
      %24 = vsyncadd [#allocation7], 0
      %s26 = sshll.u32 %s1, 4
      %s27 = int_to_ptr.hbm [resolvable:$true] %s26
      %s28 = sshll.u32 [#allocation6], 4
      %s29 = int_to_ptr.vmem [resolvable:$true] %s28
      %31 = dma.hbm_to_vmem [thread:$0]  %s27, 128, %s29, [#allocation7]
    $region9: #{tpu_custom_call.1} parent=1 // pred_fallthru
      _
    // Predicated region
    $region10: #{tpu_custom_call.1} parent=1 // pred_check
      _
    $region11: #{tpu_custom_call.1} parent=1 // pred_check_branch
      %33 = sbr.rel (0) target = $region13
    $region12: #{tpu_custom_call.1} parent=1 // pred_region
      %35 = dma.done [#allocation4], 128
    $region13: #{tpu_custom_call.1} parent=1 // pred_fallthru
      _
    // Predicated region
    $region14: #{tpu_custom_call.1} parent=1 // pred_check
      _
    $region15: #{tpu_custom_call.1} parent=1 // pred_check_branch
      %37 = sbr.rel (0) target = $region17
    $region16: #{tpu_custom_call.1} parent=1 // pred_region
      %39 = dma.done [#allocation7], 128
    $region17: #{tpu_custom_call.1} parent=1 // pred_fallthru
      _
    %p40 = scmp.eq.s32.totalorder 0, 0
    // Predicated region
    $region18: #{tpu_custom_call.1} parent=1 // pred_check
      %p41 = pneg %p40
    $region19: #{tpu_custom_call.1} parent=1 // pred_check_branch
      %43 = sbr.rel (%p41) target = $region21
    $region20: #{tpu_custom_call.1} parent=1 // pred_region
      %44 = vst [vmem:[#allocation2] sm:$0xff] 0.0
    $region21: #{tpu_custom_call.1} parent=1 // pred_fallthru
      _
    %v45 = vld [vmem:[#allocation3] sm:$0xff]
    %v46 = vld [vmem:[#allocation6] sm:$0xff]
    %v47 = vsub.f32 %v45, %v46
    %v48 = vand.u32 2147483647, %v47
    %v49 = vld [vmem:[#allocation2] sm:$0xff]
    %v50 = vadd.f32 %v49, %v48
    %51 = vst [vmem:[#allocation2] sm:$0xff] %v50
    // Predicated region
    $region22: #{tpu_custom_call.1} parent=1 // pred_check
      %p52 = pneg %p40
    $region23: #{tpu_custom_call.1} parent=1 // pred_check_branch
      %54 = sbr.rel (%p52) target = $region25
    $region24: #{tpu_custom_call.1} parent=1 // pred_region
      %v55 = vld [vmem:[#allocation2] sm:$0xff]
      %56 = vadd.xlane.f32.xlu0 %v55
      %v57 = vpop.xlane.xlu0 %56
      %v58 = vrot.slane %v57, 4
      %v59 = vadd.f32 %v57, %v58
      %v60 = vrot.slane %v59, 2
      %v61 = vadd.f32 %v59, %v60
      %v62 = vrot.slane %v61, 1
      %v63 = vadd.f32 %v61, %v62
      %s64 = vtos %v63
      %s65 = scalar_lea.smem [#allocation8], 0
      %66 = sst [smem:[%s65]] %s64
    $region25: #{tpu_custom_call.1} parent=1 // pred_fallthru
      _
    // Predicated region
    $region26: #{tpu_custom_call.1} parent=1 // pred_check
      _
    $region27: #{tpu_custom_call.1} parent=1 // pred_check_branch
      %68 = sbr.rel (0) target = $region29
    $region28: #{tpu_custom_call.1} parent=1 // pred_region
      %70 = vsyncadd [#allocation5], 0
      %s72 = sshll.u32 %s2, 4
      %s73 = int_to_ptr.hbm [resolvable:$true] %s72
      %75 = dma.smem_to_hbm [#allocation8], 16, %s73, [#allocation5]
    $region29: #{tpu_custom_call.1} parent=1 // pred_fallthru
      _
    // Predicated region
    $region30: #{tpu_custom_call.1} parent=1 // pred_check
      _
    $region31: #{tpu_custom_call.1} parent=1 // pred_check_branch
      %77 = sbr.rel (0) target = $region33
    $region32: #{tpu_custom_call.1} parent=1 // pred_region
      %79 = dma.done [#allocation5], 16
    $region33: #{tpu_custom_call.1} parent=1 // pred_fallthru
      _
    %80 = sfence
    %81 = vsyncpa [#allocation4], 1
    %82 = vsyncpa [#allocation7], 1
    %83 = vsyncpa [#allocation5], 1

</llo_original>
